<compile_context>
chip_gen: v7x
topology: tpu7x:2x2x1
jax: 0.10.0
libtpu: 0.0.40
codegen_flags: <defaults>
</compile_context>

<pallas_src>
import jax
import jax.numpy as jnp
from jax.experimental import pallas as pl
from jax.experimental.pallas import tpu as pltpu

LANE = 128          # lane width of packed layout
MAX_TILE_R = 1024   # max packed rows per grid step (1024*128*4B = 512 KiB/stream)


def _fused_sse_kernel(preds_ref, tgt_ref, mask_ref, sse_ref, acc_ref):
    """Accumulate masked sum of squared diffs over all prediction keys.

    preds_ref : (K, TILE_R, LANE) f32  stacked predictions
    tgt_ref   : (TILE_R, LANE)    f32  targets (packed)
    mask_ref  : (TILE_R, LANE)    f32  per-element mask (packed)
    sse_ref   : (1, 1, 1)         f32  per-split partial SSE (written at end)
    acc_ref   : (8, LANE)         f32  VMEM accumulator (vreg-shaped)
    """
    i = pl.program_id(1)

    @pl.when(i == 0)
    def _():
        acc_ref[...] = jnp.zeros_like(acc_ref)

    t = tgt_ref[...]
    sq = jnp.zeros_like(t)
    for k in range(preds_ref.shape[0]):        # K is static (<= 3)
        d = preds_ref[k] - t
        sq = sq + d * d
    sq = sq * mask_ref[...]                    # zero out unselected rays / pad

    # Fold (TILE_R, LANE) into the vreg-shaped accumulator with pure VPU adds;
    # no cross-lane (XLU) reduction in the steady-state loop.
    tr = sq.shape[0]
    acc_ref[...] += jnp.sum(sq.reshape(tr // 8, 8, LANE), axis=0)

    @pl.when(i == pl.num_programs(1) - 1)
    def _():
        sse_ref[...] = jnp.sum(acc_ref[...]).reshape(1, 1, 1)


@jax.jit
def _fused_masked_mse(preds, targets, mask):
    """sum_k mean((preds[k][mask] - targets[mask])**2) via one Pallas call.

    preds   : (K, N, C) float
    targets : (N, C)    float
    mask    : (1, N)    bool
    """
    K, N, C = preds.shape
    total = N * C

    # Packed layout: flatten to 1-D and reshape to (rows, 128); only the tail
    # is zero-padded (zeros contribute nothing to the masked SSE).
    rows = pl.cdiv(total, LANE)
    tile_r = min(MAX_TILE_R, max(8, ((rows + 7) // 8) * 8))
    row_tiles = pl.cdiv(rows, tile_r)
    num_splits = 2 if row_tiles >= 2 else 1          # 2 TCs on v7x; harmless elsewhere
    steps = pl.cdiv(row_tiles, num_splits)
    rows_p = steps * num_splits * tile_r
    pad = rows_p * LANE - total

    preds_p = jnp.pad(preds.reshape(K, total).astype(jnp.float32),
                      ((0, 0), (0, pad))).reshape(K, rows_p, LANE)
    tgt_p = jnp.pad(targets.reshape(total).astype(jnp.float32),
                    (0, pad)).reshape(rows_p, LANE)
    mask_rows = mask[0]
    mask_p = jnp.pad(
        jnp.broadcast_to(mask_rows[:, None], (N, C)).astype(jnp.float32).reshape(total),
        (0, pad)).reshape(rows_p, LANE)

    sse_parts = pl.pallas_call(
        _fused_sse_kernel,
        out_shape=jax.ShapeDtypeStruct((num_splits, 1, 1), jnp.float32),
        grid=(num_splits, steps),
        in_specs=[
            pl.BlockSpec((K, tile_r, LANE),
                         lambda c, i: (0, c * steps + i, 0)),
            pl.BlockSpec((tile_r, LANE),
                         lambda c, i: (c * steps + i, 0)),
            pl.BlockSpec((tile_r, LANE),
                         lambda c, i: (c * steps + i, 0)),
        ],
        out_specs=pl.BlockSpec((1, 1, 1), lambda c, i: (c, 0, 0)),
        scratch_shapes=[pltpu.VMEM((8, LANE), jnp.float32)],
        compiler_params=pltpu.CompilerParams(
            dimension_semantics=("parallel", "arbitrary")),
    )(preds_p, tgt_p, mask_p)

    sse = jnp.sum(sse_parts)

    n_sel = jnp.sum(mask_rows.astype(jnp.float32))
    any_sel = jnp.sum(mask.astype(jnp.float32)) > 0
    denom = jnp.maximum(n_sel, 1.0) * jnp.float32(C)
    return jnp.where(any_sel, sse / denom, jnp.float32(0.0))


def mse_loss_forward(inputs, targets, mask):
    """JAX/Pallas equivalent of MSELoss.forward.

    inputs : dict with any of 'rgb_coarse', 'rgb_coarse2', 'rgb_fine' -> (N, C)
    targets: (N, C)
    mask   : (1, N) bool (mask[0] selects rays, as in the PyTorch module)
    """
    keys = [k for k in ('rgb_coarse', 'rgb_coarse2', 'rgb_fine') if k in inputs]
    if not keys:
        z = jnp.float32(0.0)
        return {'tot': z, 'l2': z}
    preds = jnp.stack([inputs[k] for k in keys], axis=0)
    loss = _fused_masked_mse(preds, targets, mask)
    return {'tot': loss, 'l2': loss}


def _reference(inputs, targets, mask):
    # Pure-JAX reference (same masked-mean math, no dynamic shapes).
    mf = mask[0].astype(jnp.float32)[:, None]
    n_sel = jnp.maximum(jnp.sum(mf), 1.0)
    C = targets.shape[1]
    ref = jnp.float32(0.0)
    for k in ('rgb_coarse', 'rgb_coarse2', 'rgb_fine'):
        if k in inputs:
            d = inputs[k] - targets
            ref = ref + jnp.sum(d * d * mf) / (n_sel * C)
    return jnp.where(jnp.sum(mask) > 0, ref, 0.0)


if __name__ == "__main__":
    key = jax.random.PRNGKey(0)

    # Small case (matches the module's typical (N, 3) rays + (1, N) mask).
    N, C = 256, 3
    k1, k2, k3, k4, k5 = jax.random.split(key, 5)
    inputs = {
        'rgb_coarse':  jax.random.uniform(k1, (N, C), dtype=jnp.float32),
        'rgb_coarse2': jax.random.uniform(k2, (N, C), dtype=jnp.float32),
        'rgb_fine':    jax.random.uniform(k3, (N, C), dtype=jnp.float32),
    }
    targets = jax.random.uniform(k4, (N, C), dtype=jnp.float32)
    mask = jax.random.bernoulli(k5, p=0.7, shape=(1, N))  # (1, N) bool

    out = mse_loss_forward(inputs, targets, mask)
    jax.block_until_ready(out)
    ref = _reference(inputs, targets, mask)
    assert jnp.allclose(out['tot'], ref, rtol=1e-5, atol=1e-6), (out['tot'], ref)
    assert jnp.allclose(out['l2'], out['tot'])

    # Empty-mask case -> 0.0 (matches `if mask.sum() > 0` in the module).
    empty_mask = jnp.zeros((1, N), dtype=bool)
    out0 = mse_loss_forward(inputs, targets, empty_mask)
    jax.block_until_ready(out0)
    assert jnp.allclose(out0['tot'], 0.0)

    # Larger case to exercise the multi-tile grid and the 2-way split path.
    N2 = 50000
    k6, k7, k8, k9 = jax.random.split(jax.random.PRNGKey(1), 4)
    inputs2 = {
        'rgb_coarse': jax.random.uniform(k6, (N2, C), dtype=jnp.float32),
        'rgb_fine':   jax.random.uniform(k7, (N2, C), dtype=jnp.float32),
    }
    targets2 = jax.random.uniform(k8, (N2, C), dtype=jnp.float32)
    mask2 = jax.random.bernoulli(k9, p=0.5, shape=(1, N2))
    out2 = mse_loss_forward(inputs2, targets2, mask2)
    jax.block_until_ready(out2)
    ref2 = _reference(inputs2, targets2, mask2)
    assert jnp.allclose(out2['tot'], ref2, rtol=1e-4, atol=1e-5), (out2['tot'], ref2)

    print("KERNEL_OK")
</pallas_src>

<mosaic_0001>
module attributes {stable_mosaic.version = 11 : i64} {
  func.func @_fused_sse_kernel(%arg0: i32, %arg1: i32, %arg2: memref<3x8x128xf32, #tpu.memory_space<vmem>>, %arg3: memref<8x128xf32, #tpu.memory_space<vmem>>, %arg4: memref<8x128xf32, #tpu.memory_space<vmem>>, %arg5: memref<1x1x1xf32, #tpu.memory_space<vmem>>, %arg6: memref<8x128xf32, #tpu.memory_space<vmem>>) attributes {dimension_semantics = [#tpu.dimension_semantics<parallel>, #tpu.dimension_semantics<arbitrary>], iteration_bounds = array<i64: 1, 1>, scalar_prefetch = 0 : i64, scratch_operands = 1 : i64, tpu.core_type = #tpu.core_type<tc>, window_params = [{transform_indices = @transform_0, window_bounds = array<i64: 3, 8, 128>}, {transform_indices = @transform_1, window_bounds = array<i64: 8, 128>}, {transform_indices = @transform_2, window_bounds = array<i64: 8, 128>}, {transform_indices = @transform_3, window_bounds = array<i64: 1, 1, 1>}]} {
    %c0_i32 = arith.constant 0 : i32
    %0 = arith.cmpi eq, %arg1, %c0_i32 : i32
    %1 = arith.extui %0 : i1 to i32
    %c0_i32_0 = arith.constant 0 : i32
    %2 = arith.cmpi ne, %1, %c0_i32_0 : i32
    scf.if %2 {
      %cst_18 = arith.constant 0.000000e+00 : f32
      %30 = vector.broadcast %cst_18 : f32 to vector<8x128xf32>
      %c0_19 = arith.constant 0 : index
      %c0_20 = arith.constant 0 : index
      %31 = vector.load %arg6[%c0_19, %c0_20] : memref<8x128xf32, #tpu.memory_space<vmem>>, vector<8x128xf32>
      tpu.vector_store %arg6[%c0_19, %c0_20], %30 {strides = array<i32>} : memref<8x128xf32, #tpu.memory_space<vmem>>, vector<8x128xf32>,
    } else {
    }
    %c0 = arith.constant 0 : index
    %c0_1 = arith.constant 0 : index
    %3 = vector.load %arg3[%c0, %c0_1] : memref<8x128xf32, #tpu.memory_space<vmem>>, vector<8x128xf32>
    %cst = arith.constant 0.000000e+00 : f32
    %4 = vector.broadcast %cst : f32 to vector<8x128xf32>
    %c0_2 = arith.constant 0 : index
    %c0_3 = arith.constant 0 : index
    %c0_4 = arith.constant 0 : index
    %5 = vector.load %arg2[%c0_2, %c0_3, %c0_4] : memref<3x8x128xf32, #tpu.memory_space<vmem>>, vector<1x8x128xf32>
    %6 = vector.shape_cast %5 : vector<1x8x128xf32> to vector<8x128xf32>
    %7 = arith.subf %6, %3 : vector<8x128xf32>
    %8 = arith.mulf %7, %7 : vector<8x128xf32>
    %9 = arith.addf %4, %8 : vector<8x128xf32>
    %c1 = arith.constant 1 : index
    %c0_5 = arith.constant 0 : index
    %c0_6 = arith.constant 0 : index
    %10 = vector.load %arg2[%c1, %c0_5, %c0_6] : memref<3x8x128xf32, #tpu.memory_space<vmem>>, vector<1x8x128xf32>
    %11 = vector.shape_cast %10 : vector<1x8x128xf32> to vector<8x128xf32>
    %12 = arith.subf %11, %3 : vector<8x128xf32>
    %13 = arith.mulf %12, %12 : vector<8x128xf32>
    %14 = arith.addf %9, %13 : vector<8x128xf32>
    %c2 = arith.constant 2 : index
    %c0_7 = arith.constant 0 : index
    %c0_8 = arith.constant 0 : index
    %15 = vector.load %arg2[%c2, %c0_7, %c0_8] : memref<3x8x128xf32, #tpu.memory_space<vmem>>, vector<1x8x128xf32>
    %16 = vector.shape_cast %15 : vector<1x8x128xf32> to vector<8x128xf32>
    %17 = arith.subf %16, %3 : vector<8x128xf32>
    %18 = arith.mulf %17, %17 : vector<8x128xf32>
    %19 = arith.addf %14, %18 : vector<8x128xf32>
    %c0_9 = arith.constant 0 : index
    %c0_10 = arith.constant 0 : index
    %20 = vector.load %arg4[%c0_9, %c0_10] : memref<8x128xf32, #tpu.memory_space<vmem>>, vector<8x128xf32>
    %21 = arith.mulf %19, %20 : vector<8x128xf32>
    %c0_11 = arith.constant 0 : index
    %c0_12 = arith.constant 0 : index
    %22 = vector.load %arg6[%c0_11, %c0_12] : memref<8x128xf32, #tpu.memory_space<vmem>>, vector<8x128xf32>
    %23 = vector.shape_cast %21 : vector<8x128xf32> to vector<1x8x128xf32>
    %cst_13 = arith.constant dense<0.000000e+00> : vector<8x128xf32>
    %24 = vector.multi_reduction <add>, %23, %cst_13 [0] : vector<1x8x128xf32> to vector<8x128xf32>
    %25 = arith.addf %22, %24 : vector<8x128xf32>
    %c0_14 = arith.constant 0 : index
    %c0_15 = arith.constant 0 : index
    %26 = vector.load %arg6[%c0_14, %c0_15] : memref<8x128xf32, #tpu.memory_space<vmem>>, vector<8x128xf32>
    tpu.vector_store %arg6[%c0_14, %c0_15], %25 {strides = array<i32>} : memref<8x128xf32, #tpu.memory_space<vmem>>, vector<8x128xf32>,
    %c0_i32_16 = arith.constant 0 : i32
    %27 = arith.cmpi eq, %arg1, %c0_i32_16 : i32
    %28 = arith.extui %27 : i1 to i32
    %c0_i32_17 = arith.constant 0 : i32
    %29 = arith.cmpi ne, %28, %c0_i32_17 : i32
    scf.if %29 {
      %c0_18 = arith.constant 0 : index
      %c0_19 = arith.constant 0 : index
      %30 = vector.load %arg6[%c0_18, %c0_19] : memref<8x128xf32, #tpu.memory_space<vmem>>, vector<8x128xf32>
      %31 = vector.shape_cast %30 : vector<8x128xf32> to vector<1x8x128xf32>
      %cst_20 = arith.constant dense<0.000000e+00> : vector<1xf32>
      %32 = vector.multi_reduction <add>, %31, %cst_20 [1, 2] : vector<1x8x128xf32> to vector<1xf32>
      %33 = vector.shape_cast %32 : vector<1xf32> to vector<1x1x1xf32>
      %34 = vector.extract %33[0, 0, 0] : f32 from vector<1x1x1xf32>
      %35 = vector.broadcast %34 : f32 to vector<1x1x1xf32>
      %c0_21 = arith.constant 0 : index
      %c0_22 = arith.constant 0 : index
      %c0_23 = arith.constant 0 : index
      %36 = vector.load %arg5[%c0_21, %c0_22, %c0_23] : memref<1x1x1xf32, #tpu.memory_space<vmem>>, vector<1x1x1xf32>
      tpu.vector_store %arg5[%c0_21, %c0_22, %c0_23], %35 {strides = array<i32>} : memref<1x1x1xf32, #tpu.memory_space<vmem>>, vector<1x1x1xf32>,
    } else {
    }
    return
  }
  func.func @transform_0(%arg0: i32, %arg1: i32) -> (i32, i32, i32) {
    %c1_i32 = arith.constant 1 : i32
    %0 = arith.muli %arg0, %c1_i32 : i32
    %1 = arith.addi %0, %arg1 : i32
    %c0_i32 = arith.constant 0 : i32
    %c0_i32_0 = arith.constant 0 : i32
    %c0_i32_1 = arith.constant 0 : i32
    return %c0_i32, %1, %c0_i32_0 : i32, i32, i32
  }
  func.func @transform_1(%arg0: i32, %arg1: i32) -> (i32, i32) {
    %c1_i32 = arith.constant 1 : i32
    %0 = arith.muli %arg0, %c1_i32 : i32
    %1 = arith.addi %0, %arg1 : i32
    %c0_i32 = arith.constant 0 : i32
    %c0_i32_0 = arith.constant 0 : i32
    return %1, %c0_i32 : i32, i32
  }
  func.func @transform_2(%arg0: i32, %arg1: i32) -> (i32, i32) {
    %c1_i32 = arith.constant 1 : i32
    %0 = arith.muli %arg0, %c1_i32 : i32
    %1 = arith.addi %0, %arg1 : i32
    %c0_i32 = arith.constant 0 : i32
    %c0_i32_0 = arith.constant 0 : i32
    return %1, %c0_i32 : i32, i32
  }
  func.func @transform_3(%arg0: i32, %arg1: i32) -> (i32, i32, i32) {
    %c0_i32 = arith.constant 0 : i32
    %c0_i32_0 = arith.constant 0 : i32
    %c0_i32_1 = arith.constant 0 : i32
    return %arg0, %c0_i32, %c0_i32_0 : i32, i32, i32
  }
}

</mosaic_0001>

<llo_original>
// kernel: _fused_masked_mse.1
$region0: #{_fused_masked_mse.1}
  #allocation0 [shape = 'u32[]', space=smem, size = 0x4, offset = 0x4, fixed_abs, tag = 'smem constant byte address 0x4 - core index']
  #allocation1 [shape = 'u32[144,128]{1,0:T(1,128)}', space=vmem, size = 0x12000, scoped, tag = 'internal scratch']
  #allocation2 [shape = 'f32[8,128]{1,0:T(8,128)}', space=vmem, size = 0x1000, scoped, tag = 'scratch operand']
  %s0 = inlined_call_operand.vmem [shape: f32[3,8,128], index: 0, kind: input, shape index: {}]
  %s1 = inlined_call_operand.vmem [shape: f32[8,128], index: 1, kind: input, shape index: {}]
  %s2 = inlined_call_operand.vmem [shape: f32[8,128], index: 2, kind: input, shape index: {}]
  %s3 = inlined_call_operand.hbm [shape: f32[1,1,1], index: 3, kind: output, shape index: {}]
  %s4 = sld [smem:[#allocation0]]
  $region30: #{_fused_masked_mse.1} parent=0
    _
  %s6 = ssub.s32 1, %s4
  %s7 = scalar_select 0, %s6, %s4
  $region1: #{_fused_masked_mse.1} parent=0
    #allocation3 [shape = 'u8[512]{0}', space=vmem, size = 0x400, scoped, tag = 'output window, operand 0, single buffered']
    #allocation4 [shape = 's32[1]{0}', space=sflag, size = 0x4, scoped, tag = 'scoped memory for _fused_masked_mse.1']
    %8 = vsyncpa [#allocation4], 0
    // Predicated region
    $region2: #{_fused_masked_mse.1} parent=1 // pred_check
      _
    $region3: #{_fused_masked_mse.1} parent=1 // pred_check_branch
      %10 = sbr.rel (0) target = $region5
    $region4: #{_fused_masked_mse.1} parent=1 // pred_region
      %s11 = sadd.s32 0, 0
      %p12 = scmp.lt.s32.totalorder %s11, 0
      %s13 = scalar_select %p12, %s11, 0
      %s14 = smul.addr %s13, 8
      %s15 = scalar_lea.vmem %s0, %s14
      %s16 = sadd.s32 0, 0
    $region5: #{_fused_masked_mse.1} parent=1 // pred_fallthru
      _
    // Predicated region
    $region6: #{_fused_masked_mse.1} parent=1 // pred_check
      _
    $region7: #{_fused_masked_mse.1} parent=1 // pred_check_branch
      %18 = sbr.rel (0) target = $region9
    $region8: #{_fused_masked_mse.1} parent=1 // pred_region
      %s19 = sadd.s32 0, 0
      %p20 = scmp.lt.s32.totalorder %s19, 0
      %s21 = scalar_select %p20, %s19, 0
      %s22 = smul.addr %s21, 8
      %s23 = scalar_lea.vmem %s1, %s22
      %s24 = sadd.s32 0, 0
    $region9: #{_fused_masked_mse.1} parent=1 // pred_fallthru
      _
    // Predicated region
    $region10: #{_fused_masked_mse.1} parent=1 // pred_check
      _
    $region11: #{_fused_masked_mse.1} parent=1 // pred_check_branch
      %26 = sbr.rel (0) target = $region13
    $region12: #{_fused_masked_mse.1} parent=1 // pred_region
      %s27 = sadd.s32 0, 0
      %p28 = scmp.lt.s32.totalorder %s27, 0
      %s29 = scalar_select %p28, %s27, 0
      %s30 = smul.addr %s29, 8
      %s31 = scalar_lea.vmem %s2, %s30
      %s32 = sadd.s32 0, 0
    $region13: #{_fused_masked_mse.1} parent=1 // pred_fallthru
      _
    %s33 = sadd.s32 0, 0
    %p34 = scmp.lt.s32.totalorder %s33, 0
    %s35 = scalar_select %p34, %s33, 0
    %s36 = smul.addr %s35, 8
    %s37 = scalar_lea.vmem %s0, %s36
    %s38 = sadd.s32 0, 0
    %p39 = scmp.lt.s32.totalorder %s38, 0
    %s40 = scalar_select %p39, %s38, 0
    %s41 = smul.addr %s40, 8
    %s42 = scalar_lea.vmem %s1, %s41
    %s43 = sadd.s32 0, 0
    %p44 = scmp.lt.s32.totalorder %s43, 0
    %s45 = scalar_select %p44, %s43, 0
    %s46 = smul.addr %s45, 8
    %s47 = scalar_lea.vmem %s2, %s46
    %s48 = sadd.s32 0, 0
    %p49 = scmp.lt.s32.totalorder %s48, 0
    %s50 = scalar_select %p49, %s48, 0
    %s51 = smul.addr %s50, 8
    %s52 = scalar_lea.vmem %s0, %s51
    %s53 = sadd.s32 0, 0
    %s54 = sadd.s32 0, 0
    %p55 = scmp.lt.s32.totalorder %s54, 0
    %s56 = scalar_select %p55, %s54, 0
    %s57 = smul.addr %s56, 8
    %s58 = scalar_lea.vmem %s1, %s57
    %s59 = sadd.s32 0, 0
    %s60 = sadd.s32 0, 0
    %p61 = scmp.lt.s32.totalorder %s60, 0
    %s62 = scalar_select %p61, %s60, 0
    %s63 = smul.addr %s62, 8
    %s64 = scalar_lea.vmem %s2, %s63
    %s65 = sadd.s32 0, 0
    %p66 = scmp.eq.s32.totalorder 0, 0
    // Predicated region
    $region14: #{_fused_masked_mse.1} parent=1 // pred_check
      %p67 = pneg %p66
    $region15: #{_fused_masked_mse.1} parent=1 // pred_check_branch
      %69 = sbr.rel (%p67) target = $region17
    $region16: #{_fused_masked_mse.1} parent=1 // pred_region
      %70 = vst [vmem:[#allocation2] sm:$0xff] 0.0
    $region17: #{_fused_masked_mse.1} parent=1 // pred_fallthru
      _
    %v71 = vld [vmem:[%s58] sm:$0xff]
    %v72 = vld [vmem:[%s52] sm:$0xff]
    %v73 = vsub.f32 %v72, %v71
    %v74 = vmul.f32 %v73, %v73
    %v75 = vadd.f32 %v74, 0.0
    %s76 = scalar_lea.vmem %s52, 8
    %v77 = vld [vmem:[%s76] sm:$0xff]
    %v78 = vsub.f32 %v77, %v71
    %v79 = vmul.f32 %v78, %v78
    %v80 = vadd.f32 %v75, %v79
    %s81 = scalar_lea.vmem %s52, 16
    %v82 = vld [vmem:[%s81] sm:$0xff]
    %v83 = vsub.f32 %v82, %v71
    %v84 = vmul.f32 %v83, %v83
    %v85 = vadd.f32 %v80, %v84
    %v86 = vld [vmem:[%s64] sm:$0xff]
    %v87 = vmul.f32 %v85, %v86
    %v88 = vld [vmem:[#allocation2] sm:$0xff]
    %v89 = vadd.f32 %v87, 0.0
    %v90 = vadd.f32 %v88, %v89
    %91 = vst [vmem:[#allocation2] sm:$0xff] %v90
    // Predicated region
    $region18: #{_fused_masked_mse.1} parent=1 // pred_check
      %p92 = pneg %p66
    $region19: #{_fused_masked_mse.1} parent=1 // pred_check_branch
      %94 = sbr.rel (%p92) target = $region21
    $region20: #{_fused_masked_mse.1} parent=1 // pred_region
      %v95 = vld [vmem:[#allocation2] sm:$0xff]
      %96 = vadd.xlane.f32.xlu0 %v95
      %v97 = vpop.xlane.xlu0 %96
      %v98 = vrot.slane %v97, 4
      %v99 = vadd.f32 %v97, %v98
      %v100 = vrot.slane %v99, 2
      %v101 = vadd.f32 %v99, %v100
      %v102 = vrot.slane %v101, 1
      %v103 = vadd.f32 %v101, %v102
      %s104 = vtos %v103
      %v105 = vstv %s104
      %vm106 = vcmask 0
      %107 = vst.msk [vmem:[#allocation3] sm:$0x1] %vm106, %v105
    $region21: #{_fused_masked_mse.1} parent=1 // pred_fallthru
      _
    // Predicated region
    $region22: #{_fused_masked_mse.1} parent=1 // pred_check
      _
    $region23: #{_fused_masked_mse.1} parent=1 // pred_check_branch
      %109 = sbr.rel (0) target = $region25
    $region24: #{_fused_masked_mse.1} parent=1 // pred_region
      %s111 = ssub.s32 16, 16
      %112 = vsyncadd [#allocation4], %s111
      %s114 = sshll.u32 [#allocation3], 4
      %s115 = int_to_ptr.vmem [resolvable:$true] %s114
      %117 = dma.vmem_to_hbm [thread:$0]  %s115, 16, %s3, [#allocation4]
    $region25: #{_fused_masked_mse.1} parent=1 // pred_fallthru
      _
    // Predicated region
    $region26: #{_fused_masked_mse.1} parent=1 // pred_check
      _
    $region27: #{_fused_masked_mse.1} parent=1 // pred_check_branch
      %119 = sbr.rel (0) target = $region29
    $region28: #{_fused_masked_mse.1} parent=1 // pred_region
      %120 = dma.done [#allocation4], 16
    $region29: #{_fused_masked_mse.1} parent=1 // pred_fallthru
      _
    %121 = vsyncpa [#allocation4], 1

</llo_original>
